<compile_context>
chip_gen: v5e
topology: v5e:2x2
jax: 0.10.0
libtpu: 0.0.40
codegen_flags: <defaults>
</compile_context>

<pallas_src>
import functools
import math

import jax
import jax.numpy as jnp
from jax.experimental import pallas as pl
from jax.experimental.pallas import tpu as pltpu


def _pim_kernel(x1_ref, x2_ref, w_ref, bias_ref, o_ref, *, b):
    # x1_ref / x2_ref / o_ref : (1, C, TILE_N) VMEM tiles
    # w_ref  : (C, C) resident weight, bias_ref : (C, 1) resident bias
    x1 = x1_ref[0].astype(jnp.float32)          # (C, TILE_N)
    x2 = x2_ref[0].astype(jnp.float32)
    w = w_ref[...].astype(jnp.float32)          # (C, C)
    bias = bias_ref[...].astype(jnp.float32)    # (C, 1) -> broadcasts over lanes

    # Shared 1x1 conv == channel matmul on the MXU (f32 accumulation).
    z1 = jnp.dot(w, x1, preferred_element_type=jnp.float32) + bias
    z2 = jnp.dot(w, x2, preferred_element_type=jnp.float32) + bias

    p1 = jax.nn.sigmoid(z1) * (1.0 - b) + b     # in [b, 1]
    p2 = jax.nn.sigmoid(z2)
    one_m_p1 = 1.0 - p1

    out = (p1 * x1
           + one_m_p1 * p2 * x2
           + one_m_p1 * (1.0 - p2) * (x1 + x2) * 0.5)
    o_ref[0] = out.astype(o_ref.dtype)


def _pick_tile_n(hw):
    """Largest 128-multiple tile (<= 2048) that divides hw; else full extent."""
    if hw % 128 != 0:
        return hw  # ragged fallback: full-extent last-dim block is always legal
    for cand in (2048, 1024, 512, 256, 128):
        if hw % cand == 0:
            return cand
    return hw


def pim_forward(x1t, x2t, weight, bias, b=0.5, *, tile_n=None):
    """Pallas implementation of PIM.forward.

    x1t, x2t : (B, C, H, W) NCHW arrays (same layout as PyTorch).
    weight   : (C, C, 1, 1) or (C, C) conv weight (shared for both inputs).
    bias     : (C,) conv bias.
    """
    assert x1t.shape == x2t.shape, "x1t and x2t must have the same shape"
    B, C, H, W = x1t.shape
    HW = H * W

    x1f = x1t.reshape(B, C, HW)
    x2f = x2t.reshape(B, C, HW)
    w2d = weight.reshape(C, C)
    b2d = bias.reshape(C, 1)

    if tile_n is None:
        tile_n = _pick_tile_n(HW)
    grid = (B, HW // tile_n)

    kernel = functools.partial(_pim_kernel, b=float(b))

    out = pl.pallas_call(
        kernel,
        out_shape=jax.ShapeDtypeStruct((B, C, HW), x1t.dtype),
        grid_spec=pltpu.PrefetchScalarGridSpec(
            num_scalar_prefetch=0,
            grid=grid,
            in_specs=[
                pl.BlockSpec((1, C, tile_n), lambda bi, ni: (bi, 0, ni)),  # x1
                pl.BlockSpec((1, C, tile_n), lambda bi, ni: (bi, 0, ni)),  # x2
                pl.BlockSpec((C, C), lambda bi, ni: (0, 0)),               # weight (resident)
                pl.BlockSpec((C, 1), lambda bi, ni: (0, 0)),               # bias (resident)
            ],
            out_specs=pl.BlockSpec((1, C, tile_n), lambda bi, ni: (bi, 0, ni)),
        ),
        compiler_params=pltpu.CompilerParams(
            dimension_semantics=("parallel", "parallel")),
    )(x1f, x2f, w2d, b2d)

    return out.reshape(B, C, H, W)


class PIM:
    """Mirror of the PyTorch PIM module (shared 1x1 conv, b=0.5)."""

    def __init__(self, dim, *, key=None, dtype=jnp.float32):
        if key is None:
            key = jax.random.PRNGKey(0)
        kw, kb = jax.random.split(key)
        bound = 1.0 / math.sqrt(dim)  # matches PyTorch Conv2d default init scale
        self.weight = jax.random.uniform(kw, (dim, dim, 1, 1), dtype,
                                         minval=-bound, maxval=bound)
        self.bias = jax.random.uniform(kb, (dim,), dtype,
                                       minval=-bound, maxval=bound)
        self.b = 0.5

    def __call__(self, x1t, x2t):
        return pim_forward(x1t, x2t, self.weight, self.bias, self.b)


def _pim_reference(x1t, x2t, weight, bias, b=0.5):
    """Pure-JAX reference, identical math to the PyTorch module."""
    B, C, H, W = x1t.shape
    w2d = weight.reshape(C, C)
    bc = bias.reshape(1, C, 1, 1)
    z1 = jnp.einsum("oc,bchw->bohw", w2d, x1t) + bc
    z2 = jnp.einsum("oc,bchw->bohw", w2d, x2t) + bc
    p1 = jax.nn.sigmoid(z1) * (1.0 - b) + b
    p2 = jax.nn.sigmoid(z2)
    return p1 * x1t + (1 - p1) * p2 * x2t + (1 - p1) * (1 - p2) * (x1t + x2t) / 2


if __name__ == "__main__":
    key = jax.random.PRNGKey(0)
    k1, k2, kmod = jax.random.split(key, 3)

    B, C, H, W = 2, 4, 16, 16
    x1 = jax.random.normal(k1, (B, C, H, W), dtype=jnp.float32)
    x2 = jax.random.normal(k2, (B, C, H, W), dtype=jnp.float32)

    module = PIM(C, key=kmod)
    out = jax.block_until_ready(module(x1, x2))

    ref = _pim_reference(x1, x2, module.weight, module.bias, module.b)
    assert out.shape == x1.shape and out.dtype == x1.dtype
    assert jnp.allclose(out, ref, atol=1e-5, rtol=1e-5), "mismatch vs reference"

    print("KERNEL_OK")
</pallas_src>

<mosaic_0001>
module attributes {stable_mosaic.version = 11 : i64} {
  func.func @_pim_kernel(%arg0: i32, %arg1: i32, %arg2: memref<1x4x256xf32, #tpu.memory_space<vmem>>, %arg3: memref<1x4x256xf32, #tpu.memory_space<vmem>>, %arg4: memref<4x4xf32, #tpu.memory_space<vmem>>, %arg5: memref<4x1xf32, #tpu.memory_space<vmem>>, %arg6: memref<1x4x256xf32, #tpu.memory_space<vmem>>) attributes {dimension_semantics = [#tpu.dimension_semantics<parallel>, #tpu.dimension_semantics<parallel>], iteration_bounds = array<i64: 2, 1>, scalar_prefetch = 0 : i64, scratch_operands = 0 : i64, tpu.core_type = #tpu.core_type<tc>, window_params = [{transform_indices = @transform_0, window_bounds = array<i64: 1, 4, 256>}, {transform_indices = @transform_1, window_bounds = array<i64: 1, 4, 256>}, {pipeline_mode = #tpu.pipeline_mode<synchronous>, transform_indices = @transform_2, window_bounds = array<i64: 4, 4>}, {pipeline_mode = #tpu.pipeline_mode<synchronous>, transform_indices = @transform_3, window_bounds = array<i64: 4, 1>}, {transform_indices = @transform_4, window_bounds = array<i64: 1, 4, 256>}]} {
    %c0 = arith.constant 0 : index
    %c0_0 = arith.constant 0 : index
    %c0_1 = arith.constant 0 : index
    %0 = vector.load %arg2[%c0, %c0_0, %c0_1] : memref<1x4x256xf32, #tpu.memory_space<vmem>>, vector<1x4x256xf32>
    %1 = vector.shape_cast %0 : vector<1x4x256xf32> to vector<4x256xf32>
    %c0_2 = arith.constant 0 : index
    %c0_3 = arith.constant 0 : index
    %c0_4 = arith.constant 0 : index
    %2 = vector.load %arg3[%c0_2, %c0_3, %c0_4] : memref<1x4x256xf32, #tpu.memory_space<vmem>>, vector<1x4x256xf32>
    %3 = vector.shape_cast %2 : vector<1x4x256xf32> to vector<4x256xf32>
    %c0_5 = arith.constant 0 : index
    %c0_6 = arith.constant 0 : index
    %4 = vector.load %arg4[%c0_5, %c0_6] : memref<4x4xf32, #tpu.memory_space<vmem>>, vector<4x4xf32>
    %c0_7 = arith.constant 0 : index
    %c0_8 = arith.constant 0 : index
    %5 = vector.load %arg5[%c0_7, %c0_8] : memref<4x1xf32, #tpu.memory_space<vmem>>, vector<4x1xf32>
    %cst = arith.constant dense<0.000000e+00> : vector<4x256xf32>
    %6 = tpu.matmul %4, %1, %cst {dimension_numbers = #tpu.dot_dimension_numbers<[1], [0], [0], [1], [0, 0, 1, 1], [], []>} : vector<4x4xf32>, vector<4x256xf32>, vector<4x256xf32> -> vector<4x256xf32>
    %7 = vector.broadcast %5 : vector<4x1xf32> to vector<4x256xf32>
    %8 = arith.addf %6, %7 : vector<4x256xf32>
    %cst_9 = arith.constant dense<0.000000e+00> : vector<4x256xf32>
    %9 = tpu.matmul %4, %3, %cst_9 {dimension_numbers = #tpu.dot_dimension_numbers<[1], [0], [0], [1], [0, 0, 1, 1], [], []>} : vector<4x4xf32>, vector<4x256xf32>, vector<4x256xf32> -> vector<4x256xf32>
    %10 = vector.broadcast %5 : vector<4x1xf32> to vector<4x256xf32>
    %11 = arith.addf %9, %10 : vector<4x256xf32>
    %12 = arith.negf %8 : vector<4x256xf32>
    %13 = math.exp %12 : vector<4x256xf32>
    %cst_10 = arith.constant 1.000000e+00 : f32
    %14 = vector.broadcast %cst_10 : f32 to vector<4x256xf32>
    %15 = arith.addf %14, %13 : vector<4x256xf32>
    %16 = arith.divf %14, %15 : vector<4x256xf32>
    %cst_11 = arith.constant 5.000000e-01 : f32
    %17 = vector.broadcast %cst_11 : f32 to vector<4x256xf32>
    %18 = arith.mulf %16, %17 : vector<4x256xf32>
    %cst_12 = arith.constant 5.000000e-01 : f32
    %19 = vector.broadcast %cst_12 : f32 to vector<4x256xf32>
    %20 = arith.addf %18, %19 : vector<4x256xf32>
    %21 = arith.negf %11 : vector<4x256xf32>
    %22 = math.exp %21 : vector<4x256xf32>
    %cst_13 = arith.constant 1.000000e+00 : f32
    %23 = vector.broadcast %cst_13 : f32 to vector<4x256xf32>
    %24 = arith.addf %23, %22 : vector<4x256xf32>
    %25 = arith.divf %23, %24 : vector<4x256xf32>
    %cst_14 = arith.constant 1.000000e+00 : f32
    %26 = vector.broadcast %cst_14 : f32 to vector<4x256xf32>
    %27 = arith.subf %26, %20 : vector<4x256xf32>
    %28 = arith.mulf %20, %1 : vector<4x256xf32>
    %29 = arith.mulf %27, %25 : vector<4x256xf32>
    %30 = arith.mulf %29, %3 : vector<4x256xf32>
    %31 = arith.addf %28, %30 : vector<4x256xf32>
    %cst_15 = arith.constant 1.000000e+00 : f32
    %32 = vector.broadcast %cst_15 : f32 to vector<4x256xf32>
    %33 = arith.subf %32, %25 : vector<4x256xf32>
    %34 = arith.mulf %27, %33 : vector<4x256xf32>
    %35 = arith.addf %1, %3 : vector<4x256xf32>
    %36 = arith.mulf %34, %35 : vector<4x256xf32>
    %cst_16 = arith.constant 5.000000e-01 : f32
    %37 = vector.broadcast %cst_16 : f32 to vector<4x256xf32>
    %38 = arith.mulf %36, %37 : vector<4x256xf32>
    %39 = arith.addf %31, %38 : vector<4x256xf32>
    %c0_17 = arith.constant 0 : index
    %c0_18 = arith.constant 0 : index
    %c0_19 = arith.constant 0 : index
    %40 = vector.load %arg6[%c0_17, %c0_18, %c0_19] : memref<1x4x256xf32, #tpu.memory_space<vmem>>, vector<1x4x256xf32>
    %41 = vector.shape_cast %40 : vector<1x4x256xf32> to vector<4x256xf32>
    %42 = vector.shape_cast %39 : vector<4x256xf32> to vector<1x4x256xf32>
    tpu.vector_store %arg6[%c0_17, %c0_18, %c0_19], %42 {strides = array<i32>} : memref<1x4x256xf32, #tpu.memory_space<vmem>>, vector<1x4x256xf32>,
    return
  }
  func.func @transform_0(%arg0: i32, %arg1: i32) -> (i32, i32, i32) {
    %c0_i32 = arith.constant 0 : i32
    %c0_i32_0 = arith.constant 0 : i32
    return %arg0, %c0_i32, %arg1 : i32, i32, i32
  }
  func.func @transform_1(%arg0: i32, %arg1: i32) -> (i32, i32, i32) {
    %c0_i32 = arith.constant 0 : i32
    %c0_i32_0 = arith.constant 0 : i32
    return %arg0, %c0_i32, %arg1 : i32, i32, i32
  }
  func.func @transform_2(%arg0: i32, %arg1: i32) -> (i32, i32) {
    %c0_i32 = arith.constant 0 : i32
    %c0_i32_0 = arith.constant 0 : i32
    %c0_i32_1 = arith.constant 0 : i32
    return %c0_i32, %c0_i32_0 : i32, i32
  }
  func.func @transform_3(%arg0: i32, %arg1: i32) -> (i32, i32) {
    %c0_i32 = arith.constant 0 : i32
    %c0_i32_0 = arith.constant 0 : i32
    %c0_i32_1 = arith.constant 0 : i32
    return %c0_i32, %c0_i32_0 : i32, i32
  }
  func.func @transform_4(%arg0: i32, %arg1: i32) -> (i32, i32, i32) {
    %c0_i32 = arith.constant 0 : i32
    %c0_i32_0 = arith.constant 0 : i32
    return %arg0, %c0_i32, %arg1 : i32, i32, i32
  }
}

</mosaic_0001>

<llo_original>
// kernel: tpu_custom_call.1
$region0: #{tpu_custom_call.1}
  #allocation0 [shape = 'u32[]', space=smem, size = 0x4, offset = 0x4, fixed_abs, tag = 'smem constant byte address 0x4 - core index']
  #allocation1 [shape = 'u32[72,128]{1,0:T(1,128)}', space=vmem, size = 0x9000, scoped, tag = 'internal scratch']
  %s0 = inlined_call_operand.hbm [shape: f32[2,4,256], index: 0, kind: input, shape index: {}]
  %s1 = inlined_call_operand.hbm [shape: f32[2,4,256], index: 1, kind: input, shape index: {}]
  %s2 = inlined_call_operand.vmem [shape: f32[4,4], index: 2, kind: input, shape index: {}]
  %s3 = inlined_call_operand.vmem [shape: f32[4,1], index: 3, kind: input, shape index: {}]
  %s4 = inlined_call_operand.hbm [shape: f32[2,4,256], index: 4, kind: output, shape index: {}]
  %s5 = sld [smem:[#allocation0]]
  $region57: #{tpu_custom_call.1} parent=0
    _
  %s7 = ssub.s32 1, %s5
  %s8 = scalar_select 0, %s7, %s5
  $region1: #{tpu_custom_call.1} parent=0
    #allocation2 [shape = 'u8[8192]{0}', space=vmem, size = 0x2000, scoped, tag = 'input window, operand 0']
    #allocation3 [shape = 's32[2]{0}', space=sflag, size = 0x8, scoped, tag = 'scoped memory for tpu_custom_call.1']
    #allocation4 [shape = 's32[2]{0}', space=sflag, size = 0x8, scoped, tag = 'scoped memory for tpu_custom_call.1']
    #allocation5 [shape = 'u8[8192]{0}', space=vmem, size = 0x2000, scoped, tag = 'input window, operand 1']
    #allocation6 [shape = 's32[2]{0}', space=sflag, size = 0x8, scoped, tag = 'scoped memory for tpu_custom_call.1']
    #allocation7 [shape = 'u8[8192]{0}', space=vmem, size = 0x2000, scoped, tag = 'output window, operand 0']
    %9 = vsyncpa [#allocation3], 0
    %s10 = scalar_lea.sflag [#allocation3], 1
    %11 = vsyncpa %s10, 0
    %12 = vsyncpa [#allocation6], 0
    %s13 = scalar_lea.sflag [#allocation6], 1
    %14 = vsyncpa %s13, 0
    %15 = vsyncpa [#allocation4], 0
    %s16 = scalar_lea.sflag [#allocation4], 1
    %17 = vsyncpa %s16, 0
    loop: start=0, step=1, limit=4
    $region2: #{tpu_custom_call.1} parent=1 // loop_pre_header
      _
    $region3: #{tpu_custom_call.1} parent=1 // loop_header
      %s19 = sphi 0, %s23
      %p20 = scmp.ge.s32.totalorder %s19, 4
      %s26 = sphi 0, %s38
      %s27 = sphi 0, %s34
      %s28 = sphi 0, %s26
      %s29 = sphi 0, %s27
      %s30 = sphi 0, %s28
      %s31 = sphi 0, %s29
      %s43 = sphi 0, %s45
      %s46 = sphi 0, %s43
      %s47 = sphi 0, %s46
      %s63 = sphi 0, %s47
      %s71 = sphi 0, %s73
      %s74 = sphi 0, %s71
      %s75 = sphi 0, %s74
      %s91 = sphi 0, %s75
      %s95 = sphi 0, %s95
      %s97 = sphi 0, %s95
      %s98 = sphi 0, %s97
      %s112 = sphi 0, %s98
      %s116 = sphi 0, %s116
      %s118 = sphi 0, %s116
      %s119 = sphi 0, %s118
      %s133 = sphi 0, %s119
      %s141 = sphi 0, %s143
      %s144 = sphi 0, %s141
      %s145 = sphi 0, %s144
      %s161 = sphi 0, %s145
    $region4: #{tpu_custom_call.1} parent=1 // loop_header_branch
      %22 = sbr.rel (%p20) target = $region8
    $region5: #{tpu_custom_call.1} parent=1 // loop_body
      %s24 = ssub.s32 %s19, 1
      %s25 = ssub.s32 %s19, 2
      %s32 = sadd.s32 1, %s27
      %p33 = scmp.ge.s32.totalorder %s32, 1
      %s34 = scalar_select %p33, 0, %s32
      %s35 = sadd.s32 1, %s26
      %s36 = scalar_select %p33, %s35, %s26
      %p37 = scmp.ge.s32.totalorder %s36, 2
      %s38 = scalar_select %p37, 0, %s36
      %s39 = ssub.s32 %s26, %s38
      %s40 = ssub.s32 %s27, %s34
      %s41 = sor.u32 %s39, %s40
      %p42 = scmp.eq.s32.totalorder %s41, 0
      %s44 = sadd.s32 %s43, 1
      %s45 = scalar_select %p42, %s43, %s44
      %p48 = pneg %p42
      %p49 = scmp.eq.s32.totalorder %s19, 1
      %p50 = por %p48, %p49
      %p51 = scmp.ne.s32.totalorder %s43, %s46
      %p52 = scmp.eq.s32.totalorder %s19, 0
      %p53 = por %p51, %p52
      %p54 = scmp.ne.s32.totalorder %s43, %s46
      %p55 = scmp.eq.s32.totalorder %s24, 1
      %p56 = por %p54, %p55
      %p57 = scmp.ne.s32.totalorder %s46, %s47
      %p58 = scmp.eq.s32.totalorder %s24, 0
      %p59 = por %p57, %p58
      %p60 = scmp.ne.s32.totalorder %s46, %s47
      %p61 = scmp.eq.s32.totalorder %s25, 1
      %p62 = por %p60, %p61
      %p64 = scmp.ne.s32.totalorder %s47, %s63
      %p65 = scmp.eq.s32.totalorder %s25, 0
      %p66 = por %p64, %p65
      %s67 = ssub.s32 %s26, %s38
      %s68 = ssub.s32 %s27, %s34
      %s69 = sor.u32 %s67, %s68
      %p70 = scmp.eq.s32.totalorder %s69, 0
      %s72 = sadd.s32 %s71, 1
      %s73 = scalar_select %p70, %s71, %s72
      %p76 = pneg %p70
      %p77 = scmp.eq.s32.totalorder %s19, 1
      %p78 = por %p76, %p77
      %p79 = scmp.ne.s32.totalorder %s71, %s74
      %p80 = scmp.eq.s32.totalorder %s19, 0
      %p81 = por %p79, %p80
      %p82 = scmp.ne.s32.totalorder %s71, %s74
      %p83 = scmp.eq.s32.totalorder %s24, 1
      %p84 = por %p82, %p83
      %p85 = scmp.ne.s32.totalorder %s74, %s75
      %p86 = scmp.eq.s32.totalorder %s24, 0
      %p87 = por %p85, %p86
      %p88 = scmp.ne.s32.totalorder %s74, %s75
      %p89 = scmp.eq.s32.totalorder %s25, 1
      %p90 = por %p88, %p89
      %p92 = scmp.ne.s32.totalorder %s75, %s91
      %p93 = scmp.eq.s32.totalorder %s25, 0
      %p94 = por %p92, %p93
      %s96 = sadd.s32 %s95, 1
      %p99 = scmp.eq.s32.totalorder %s19, 1
      %p100 = scmp.ne.s32.totalorder %s95, %s97
      %p101 = scmp.eq.s32.totalorder %s19, 0
      %p102 = por %p100, %p101
      %p103 = scmp.ne.s32.totalorder %s95, %s97
      %p104 = scmp.eq.s32.totalorder %s24, 1
      %p105 = por %p103, %p104
      %p106 = scmp.ne.s32.totalorder %s97, %s98
      %p107 = scmp.eq.s32.totalorder %s24, 0
      %p108 = por %p106, %p107
      %p109 = scmp.ne.s32.totalorder %s97, %s98
      %p110 = scmp.eq.s32.totalorder %s25, 1
      %p111 = por %p109, %p110
      %p113 = scmp.ne.s32.totalorder %s98, %s112
      %p114 = scmp.eq.s32.totalorder %s25, 0
      %p115 = por %p113, %p114
      %s117 = sadd.s32 %s116, 1
      %p120 = scmp.eq.s32.totalorder %s19, 1
      %p121 = scmp.ne.s32.totalorder %s116, %s118
      %p122 = scmp.eq.s32.totalorder %s19, 0
      %p123 = por %p121, %p122
      %p124 = scmp.ne.s32.totalorder %s116, %s118
      %p125 = scmp.eq.s32.totalorder %s24, 1
      %p126 = por %p124, %p125
      %p127 = scmp.ne.s32.totalorder %s118, %s119
      %p128 = scmp.eq.s32.totalorder %s24, 0
      %p129 = por %p127, %p128
      %p130 = scmp.ne.s32.totalorder %s118, %s119
      %p131 = scmp.eq.s32.totalorder %s25, 1
      %p132 = por %p130, %p131
      %p134 = scmp.ne.s32.totalorder %s119, %s133
      %p135 = scmp.eq.s32.totalorder %s25, 0
      %p136 = por %p134, %p135
      %s137 = ssub.s32 %s26, %s38
      %s138 = ssub.s32 %s27, %s34
      %s139 = sor.u32 %s137, %s138
      %p140 = scmp.eq.s32.totalorder %s139, 0
      %s142 = sadd.s32 %s141, 1
      %s143 = scalar_select %p140, %s141, %s142
      %p146 = pneg %p140
      %p147 = scmp.eq.s32.totalorder %s19, 1
      %p148 = por %p146, %p147
      %p149 = scmp.ne.s32.totalorder %s141, %s144
      %p150 = scmp.eq.s32.totalorder %s19, 0
      %p151 = por %p149, %p150
      %p152 = scmp.ne.s32.totalorder %s141, %s144
      %p153 = scmp.eq.s32.totalorder %s24, 1
      %p154 = por %p152, %p153
      %p155 = scmp.ne.s32.totalorder %s144, %s145
      %p156 = scmp.eq.s32.totalorder %s24, 0
      %p157 = por %p155, %p156
      %p158 = scmp.ne.s32.totalorder %s144, %s145
      %p159 = scmp.eq.s32.totalorder %s25, 1
      %p160 = por %p158, %p159
      %p162 = scmp.ne.s32.totalorder %s145, %s161
      %p163 = scmp.eq.s32.totalorder %s25, 0
      %p164 = por %p162, %p163
      %p165 = scmp.le.s32.totalorder 1, %s19
      %p166 = scmp.lt.s32.totalorder %s19, 3
      %p167 = pnand %p165, %p166
      %p168 = pneg %p167
      // Predicated region
      $region9: #{tpu_custom_call.1} parent=5 // pred_check
        _
      $region10: #{tpu_custom_call.1} parent=5 // pred_check_branch
        %170 = sbr.rel (%p167) target = $region12
      $region11: #{tpu_custom_call.1} parent=5 // pred_region
        %s171 = ssub.s32 %s19, 1
        // Predicated region
        $region13: #{tpu_custom_call.1} parent=11 // pred_check
          %p172 = pneg %p108
        $region14: #{tpu_custom_call.1} parent=11 // pred_check_branch
          %174 = sbr.rel (%p172) target = $region16
        $region15: #{tpu_custom_call.1} parent=11 // pred_region
          _
        $region16: #{tpu_custom_call.1} parent=11 // pred_fallthru
          _
        // Predicated region
        $region17: #{tpu_custom_call.1} parent=11 // pred_check
          %p175 = pneg %p129
        $region18: #{tpu_custom_call.1} parent=11 // pred_check_branch
          %177 = sbr.rel (%p175) target = $region20
        $region19: #{tpu_custom_call.1} parent=11 // pred_region
          _
        $region20: #{tpu_custom_call.1} parent=11 // pred_fallthru
          _
      $region12: #{tpu_custom_call.1} parent=5 // pred_fallthru
        _
      %p178 = scmp.lt.s32.totalorder %s19, 2
      // Predicated region
      $region21: #{tpu_custom_call.1} parent=5 // pred_check
        %p179 = pneg %p178
      $region22: #{tpu_custom_call.1} parent=5 // pred_check_branch
        %181 = sbr.rel (%p179) target = $region24
      $region23: #{tpu_custom_call.1} parent=5 // pred_region
        // Predicated region
        $region25: #{tpu_custom_call.1} parent=23 // pred_check
          %p182 = pneg %p53
        $region26: #{tpu_custom_call.1} parent=23 // pred_check_branch
          %184 = sbr.rel (%p182) target = $region28
        $region27: #{tpu_custom_call.1} parent=23 // pred_region
          %s185 = sand.u32 %s43, 1
          %s186 = scalar_lea.sflag [#allocation3], %s185
          %s187 = sand.u32 %s43, 1
          %s188 = smul.addr %s187, 8
          %s189 = scalar_lea.vmem [#allocation2], %s188
          %s190 = smul.u32 2, %s27
          %192 = vsyncadd %s186, 0
          %s193 = smul.addr %s26, 2
          %s194 = sadd.s32 %s190, %s193
          %s195 = smul.addr %s194, 4
          %s196 = scalar_lea.hbm %s0, %s195
          %s198 = sshll.u32 %s196, 4
          %s199 = int_to_ptr.hbm [resolvable:$true] %s198
          %s200 = sshll.u32 %s189, 4
          %s201 = int_to_ptr.vmem [resolvable:$true] %s200
          %203 = dma.hbm_to_vmem [thread:$0]  %s199, 128, %s201, %s186
        $region28: #{tpu_custom_call.1} parent=23 // pred_fallthru
          _
        // Predicated region
        $region29: #{tpu_custom_call.1} parent=23 // pred_check
          %p204 = pneg %p81
        $region30: #{tpu_custom_call.1} parent=23 // pred_check_branch
          %206 = sbr.rel (%p204) target = $region32
        $region31: #{tpu_custom_call.1} parent=23 // pred_region
          %s207 = sand.u32 %s71, 1
          %s208 = scalar_lea.sflag [#allocation6], %s207
          %s209 = sand.u32 %s71, 1
          %s210 = smul.addr %s209, 8
          %s211 = scalar_lea.vmem [#allocation5], %s210
          %s212 = smul.u32 2, %s27
          %214 = vsyncadd %s208, 0
          %s215 = smul.addr %s26, 2
          %s216 = sadd.s32 %s212, %s215
          %s217 = smul.addr %s216, 4
          %s218 = scalar_lea.hbm %s1, %s217
          %s220 = sshll.u32 %s218, 4
          %s221 = int_to_ptr.hbm [resolvable:$true] %s220
          %s222 = sshll.u32 %s211, 4
          %s223 = int_to_ptr.vmem [resolvable:$true] %s222
          %225 = dma.hbm_to_vmem [thread:$0]  %s221, 128, %s223, %s208
        $region32: #{tpu_custom_call.1} parent=23 // pred_fallthru
          _
      $region24: #{tpu_custom_call.1} parent=5 // pred_fallthru
        _
      %p226 = scmp.le.s32.totalorder 1, %s19
      %p227 = scmp.lt.s32.totalorder %s19, 3
      %p228 = pnand %p226, %p227
      %p229 = pneg %p228
      // Predicated region
      $region33: #{tpu_custom_call.1} parent=5 // pred_check
        _
      $region34: #{tpu_custom_call.1} parent=5 // pred_check_branch
        %231 = sbr.rel (%p228) target = $region36
      $region35: #{tpu_custom_call.1} parent=5 // pred_region
        %s232 = ssub.s32 %s19, 1
        %s233 = sand.u32 %s46, 1
        %s234 = scalar_lea.sflag [#allocation3], %s233
        %s235 = sand.u32 %s46, 1
        %s236 = smul.addr %s235, 8
        %s237 = scalar_lea.vmem [#allocation2], %s236
        // Predicated region
        $region37: #{tpu_custom_call.1} parent=35 // pred_check
          %p238 = pneg %p59
        $region38: #{tpu_custom_call.1} parent=35 // pred_check_branch
          %240 = sbr.rel (%p238) target = $region40
        $region39: #{tpu_custom_call.1} parent=35 // pred_region
          %242 = dma.done %s234, 128
        $region40: #{tpu_custom_call.1} parent=35 // pred_fallthru
          _
        %s243 = sand.u32 %s74, 1
        %s244 = scalar_lea.sflag [#allocation6], %s243
        %s245 = sand.u32 %s74, 1
        %s246 = smul.addr %s245, 8
        %s247 = scalar_lea.vmem [#allocation5], %s246
        // Predicated region
        $region41: #{tpu_custom_call.1} parent=35 // pred_check
          %p248 = pneg %p87
        $region42: #{tpu_custom_call.1} parent=35 // pred_check_branch
          %250 = sbr.rel (%p248) target = $region44
        $region43: #{tpu_custom_call.1} parent=35 // pred_region
          %252 = dma.done %s244, 128
        $region44: #{tpu_custom_call.1} parent=35 // pred_fallthru
          _
        %s253 = sand.u32 %s46, 1
        %s254 = scalar_lea.sflag [#allocation3], %s253
        %s255 = sand.u32 %s46, 1
        %s256 = smul.addr %s255, 8
        %s257 = scalar_lea.vmem [#allocation2], %s256
        %p258 = pneg %p59
        %p259 = pneg %p56
        %s260 = sand.u32 %s74, 1
        %s261 = scalar_lea.sflag [#allocation6], %s260
        %s262 = sand.u32 %s74, 1
        %s263 = smul.addr %s262, 8
        %s264 = scalar_lea.vmem [#allocation5], %s263
        %p265 = pneg %p87
        %p266 = pneg %p84
        %p267 = pneg %p108
        %p268 = pneg %p105
        %p269 = pneg %p129
        %p270 = pneg %p126
        %p271 = pneg %p157
        %p272 = pneg %p154
        %s273 = sand.u32 %s144, 1
        %s274 = scalar_lea.sflag [#allocation4], %s273
        %s275 = sand.u32 %s144, 1
        %s276 = smul.addr %s275, 8
        %s277 = scalar_lea.vmem [#allocation7], %s276
        %s278 = smul.u32 2, %s29
        %s279 = smul.u32 2, %s29
        %s280 = smul.u32 2, %s29
        %v281 = vld [vmem:[%s237] sm:$0xff]
        %v282 = vld [vmem:[%s247] sm:$0xff]
        %v283 = vld [vmem:[%s2] sm:$0xf]
        %v284 = vld [vmem:[%s3] sm:$0xf]
        %286 = vset.pattern.permute.xlu0 0
        %287 = vperm.xlu0 %286, %v284
        %v288 = vpop.permute.xlu0 %287
        %291 = vst [vmem:[#allocation1] ss:$2 sm:$0xff] %v281
        %v292 = vld.sshfl [vmem:[#allocation1] sm:$0xff pattern:$0x75316420]
        %v293 = vld.sshfl [vmem:[#allocation1 + $0x8] sm:$0xff pattern:$0x75316420]
        %vm294 = vcmask 31744
        %v296 = vsel %vm294, %v283, 0
        %vm298 = vcmask 1043456
        %v299 = vsel %vm298, %v292, 0
        %v301 = vsel %vm298, %v293, 0
        %303 = vmatpush.msra.mxu0 0.0
        %304 = vmatpush.msra.mxu0 0.0
        %305 = vmatpush.msra.mxu0 0.0
        %306 = vmatpush.msra.mxu0 0.0
        %307 = vmatpush.msra.mxu0 0.0
        %308 = vmatpush.msra.mxu0 0.0
        %309 = vmatpush.msra.mxu0 0.0
        %310 = vmatpush.msra.mxu0 0.0
        %311 = vmatpush.msra.mxu0 0.0
        %312 = vmatpush.msra.mxu0 0.0
        %313 = vmatpush.msra.mxu0 0.0
        %314 = vmatpush.msra.mxu0 0.0
        %315 = vmatpush.msra.mxu0 0.0
        %316 = vmatpush.msra.mxu0 0.0
        %317 = vmatpush.msra.mxu0 0.0
        %318 = vmatpush.msra.mxu0 %v299
        %319 = vmatmul.f32.gmra.mxu0 %v296
        %v320 = vpop.f32.mrf.mxu0
        %v321 = vadd.f32 %v288, %v320
        %322 = vdwg.mxu0
        %323 = vmatpush.msra.mxu0 0.0
        %324 = vmatpush.msra.mxu0 0.0
        %325 = vmatpush.msra.mxu0 0.0
        %326 = vmatpush.msra.mxu0 0.0
        %327 = vmatpush.msra.mxu0 0.0
        %328 = vmatpush.msra.mxu0 0.0
        %329 = vmatpush.msra.mxu0 0.0
        %330 = vmatpush.msra.mxu0 0.0
        %331 = vmatpush.msra.mxu0 0.0
        %332 = vmatpush.msra.mxu0 0.0
        %333 = vmatpush.msra.mxu0 0.0
        %334 = vmatpush.msra.mxu0 0.0
        %335 = vmatpush.msra.mxu0 0.0
        %336 = vmatpush.msra.mxu0 0.0
        %337 = vmatpush.msra.mxu0 0.0
        %338 = vmatpush.msra.mxu0 %v301
        %339 = vmatmul.f32.gmra.mxu0 %v296
        %v340 = vpop.f32.mrf.mxu0
        %v341 = vadd.f32 %v288, %v340
        %342 = vdwg.mxu0
        %344 = vst [vmem:[#allocation1] ss:$2 sm:$0xff] %v282
        %v345 = vld.sshfl [vmem:[#allocation1] sm:$0xff pattern:$0x75316420]
        %v346 = vld.sshfl [vmem:[#allocation1 + $0x8] sm:$0xff pattern:$0x75316420]
        %v347 = vsel %vm298, %v345, 0
        %v349 = vsel %vm298, %v346, 0
        %351 = vmatpush.msra.mxu0 0.0
        %352 = vmatpush.msra.mxu0 0.0
        %353 = vmatpush.msra.mxu0 0.0
        %354 = vmatpush.msra.mxu0 0.0
        %355 = vmatpush.msra.mxu0 0.0
        %356 = vmatpush.msra.mxu0 0.0
        %357 = vmatpush.msra.mxu0 0.0
        %358 = vmatpush.msra.mxu0 0.0
        %359 = vmatpush.msra.mxu0 0.0
        %360 = vmatpush.msra.mxu0 0.0
        %361 = vmatpush.msra.mxu0 0.0
        %362 = vmatpush.msra.mxu0 0.0
        %363 = vmatpush.msra.mxu0 0.0
        %364 = vmatpush.msra.mxu0 0.0
        %365 = vmatpush.msra.mxu0 0.0
        %366 = vmatpush.msra.mxu0 %v347
        %367 = vmatmul.f32.gmra.mxu0 %v296
        %v368 = vpop.f32.mrf.mxu0
        %v369 = vadd.f32 %v288, %v368
        %370 = vdwg.mxu0
        %371 = vmatpush.msra.mxu0 0.0
        %372 = vmatpush.msra.mxu0 0.0
        %373 = vmatpush.msra.mxu0 0.0
        %374 = vmatpush.msra.mxu0 0.0
        %375 = vmatpush.msra.mxu0 0.0
        %376 = vmatpush.msra.mxu0 0.0
        %377 = vmatpush.msra.mxu0 0.0
        %378 = vmatpush.msra.mxu0 0.0
        %379 = vmatpush.msra.mxu0 0.0
        %380 = vmatpush.msra.mxu0 0.0
        %381 = vmatpush.msra.mxu0 0.0
        %382 = vmatpush.msra.mxu0 0.0
        %383 = vmatpush.msra.mxu0 0.0
        %384 = vmatpush.msra.mxu0 0.0
        %385 = vmatpush.msra.mxu0 0.0
        %386 = vmatpush.msra.mxu0 %v349
        %387 = vmatmul.f32.gmra.mxu0 %v296
        %v388 = vpop.f32.mrf.mxu0
        %v389 = vadd.f32 %v288, %v388
        %390 = vdwg.mxu0
        %v391 = vxor.u32 %v321, 2147483648
        %v392 = vxor.u32 %v341, 2147483648
        %v393 = vmul.f32 %v391, 1.442695
        %v394 = vpow.pop %v393
        %v395 = vmul.f32 %v392, 1.442695
        %v396 = vpow.pop %v395
        %v397 = vadd.f32 %v394, 1.0
        %v398 = vadd.f32 %v396, 1.0
        %v399 = vrcp.pop %v397
        %v400 = vmul.f32 %v397, %v399
        %v401 = vsub.f32 1.0, %v400
        %v402 = vmul.f32 %v399, %v401
        %v403 = vadd.f32 %v399, %v402
        %vm404 = vweird.f32 %v397
        %vm405 = vweird.f32 %v399
        %vm406 = vmor %vm404, %vm405
        %v407 = vsel %vm406, %v399, %v403
        %v408 = vand.u32 2147483647, %v397
        %vm409 = vcmp.eq.f32.partialorder %v408, 8.507059e+37
        %v410 = vand.u32 %v397, 2147483648
        %v411 = vor.u32 1.1754944e-38, %v410
        %v412 = vsel %vm409, %v411, %v407
        %v413 = vmul.f32 1.0, %v412
        %v414 = vrcp.pop %v398
        %v415 = vmul.f32 %v398, %v414
        %v416 = vsub.f32 1.0, %v415
        %v417 = vmul.f32 %v414, %v416
        %v418 = vadd.f32 %v414, %v417
        %vm419 = vweird.f32 %v398
        %vm420 = vweird.f32 %v414
        %vm421 = vmor %vm419, %vm420
        %v422 = vsel %vm421, %v414, %v418
        %v423 = vand.u32 2147483647, %v398
        %vm424 = vcmp.eq.f32.partialorder %v423, 8.507059e+37
        %v425 = vand.u32 %v398, 2147483648
        %v426 = vor.u32 1.1754944e-38, %v425
        %v427 = vsel %vm424, %v426, %v422
        %v428 = vmul.f32 1.0, %v427
        %v429 = vmul.f32 %v413, 0.5
        %v430 = vmul.f32 %v428, 0.5
        %v431 = vadd.f32 %v429, 0.5
        %v432 = vadd.f32 %v430, 0.5
        %v433 = vxor.u32 %v369, 2147483648
        %v434 = vxor.u32 %v389, 2147483648
        %v435 = vmul.f32 %v433, 1.442695
        %v436 = vpow.pop %v435
        %v437 = vmul.f32 %v434, 1.442695
        %v438 = vpow.pop %v437
        %v439 = vadd.f32 %v436, 1.0
        %v440 = vadd.f32 %v438, 1.0
        %v441 = vrcp.pop %v439
        %v442 = vmul.f32 %v439, %v441
        %v443 = vsub.f32 1.0, %v442
        %v444 = vmul.f32 %v441, %v443
        %v445 = vadd.f32 %v441, %v444
        %vm446 = vweird.f32 %v439
        %vm447 = vweird.f32 %v441
        %vm448 = vmor %vm446, %vm447
        %v449 = vsel %vm448, %v441, %v445
        %v450 = vand.u32 2147483647, %v439
        %vm451 = vcmp.eq.f32.partialorder %v450, 8.507059e+37
        %v452 = vand.u32 %v439, 2147483648
        %v453 = vor.u32 1.1754944e-38, %v452
        %v454 = vsel %vm451, %v453, %v449
        %v455 = vmul.f32 1.0, %v454
        %v456 = vrcp.pop %v440
        %v457 = vmul.f32 %v440, %v456
        %v458 = vsub.f32 1.0, %v457
        %v459 = vmul.f32 %v456, %v458
        %v460 = vadd.f32 %v456, %v459
        %vm461 = vweird.f32 %v440
        %vm462 = vweird.f32 %v456
        %vm463 = vmor %vm461, %vm462
        %v464 = vsel %vm463, %v456, %v460
        %v465 = vand.u32 2147483647, %v440
        %vm466 = vcmp.eq.f32.partialorder %v465, 8.507059e+37
        %v467 = vand.u32 %v440, 2147483648
        %v468 = vor.u32 1.1754944e-38, %v467
        %v469 = vsel %vm466, %v468, %v464
        %v470 = vmul.f32 1.0, %v469
        %v471 = vsub.f32 1.0, %v431
        %v472 = vsub.f32 1.0, %v432
        %473 = vst [vmem:[#allocation1] ss:$2 sm:$0xff] %v281
        %v474 = vld.sshfl [vmem:[#allocation1] sm:$0xff pattern:$0x75316420]
        %v475 = vld.sshfl [vmem:[#allocation1 + $0x8] sm:$0xff pattern:$0x75316420]
        %v478 = vmul.f32 %v431, %v474
        %v479 = vmul.f32 %v432, %v475
        %v480 = vmul.f32 %v471, %v455
        %v481 = vmul.f32 %v472, %v470
        %482 = vst [vmem:[#allocation1] ss:$2 sm:$0xff] %v282
        %v483 = vld.sshfl [vmem:[#allocation1] sm:$0xff pattern:$0x75316420]
        %v484 = vld.sshfl [vmem:[#allocation1 + $0x8] sm:$0xff pattern:$0x75316420]
        %v487 = vmul.f32 %v480, %v483
        %v488 = vmul.f32 %v481, %v484
        %v489 = vadd.f32 %v478, %v487
        %v490 = vadd.f32 %v479, %v488
        %v491 = vsub.f32 1.0, %v455
        %v492 = vsub.f32 1.0, %v470
        %v493 = vmul.f32 %v471, %v491
        %v494 = vmul.f32 %v472, %v492
        %v495 = vadd.f32 %v281, %v282
        %497 = vst [vmem:[#allocation1] ss:$2 sm:$0xff] %v495
        %v498 = vld.sshfl [vmem:[#allocation1] sm:$0xff pattern:$0x75316420]
        %v499 = vld.sshfl [vmem:[#allocation1 + $0x8] sm:$0xff pattern:$0x75316420]
        %v502 = vmul.f32 %v493, %v498
        %v503 = vmul.f32 %v494, %v499
        %v504 = vmul.f32 %v502, 0.5
        %v505 = vmul.f32 %v503, 0.5
        %v506 = vadd.f32 %v489, %v504
        %v507 = vadd.f32 %v490, %v505
        %v510 = vrot.slane %v507, 4
        %v511 = vsel %vm298, %v506, %v510
        %513 = vst [vmem:[%s277] sm:$0xff] %v511
        %s514 = sand.u32 %s144, 1
        %s515 = scalar_lea.sflag [#allocation4], %s514
        %s516 = sand.u32 %s144, 1
        %s517 = smul.addr %s516, 8
        %s518 = scalar_lea.vmem [#allocation7], %s517
        // Predicated region
        $region45: #{tpu_custom_call.1} parent=35 // pred_check
          %p519 = pneg %p154
        $region46: #{tpu_custom_call.1} parent=35 // pred_check_branch
          %521 = sbr.rel (%p519) target = $region48
        $region47: #{tpu_custom_call.1} parent=35 // pred_region
          %s522 = smul.u32 2, %s29
          %524 = vsyncadd %s515, 0
          %s525 = smul.addr %s28, 2
          %s526 = sadd.s32 %s522, %s525
          %s527 = smul.addr %s526, 4
          %s528 = scalar_lea.hbm %s4, %s527
          %s530 = sshll.u32 %s518, 4
          %s531 = int_to_ptr.vmem [resolvable:$true] %s530
          %s532 = sshll.u32 %s528, 4
          %s533 = int_to_ptr.hbm [resolvable:$true] %s532
          %535 = dma.vmem_to_hbm [thread:$0]  %s531, 128, %s533, %s515
        $region48: #{tpu_custom_call.1} parent=35 // pred_fallthru
          _
      $region36: #{tpu_custom_call.1} parent=5 // pred_fallthru
        _
      %p536 = scmp.le.s32.totalorder 2, %s19
      // Predicated region
      $region49: #{tpu_custom_call.1} parent=5 // pred_check
        %p537 = pneg %p536
      $region50: #{tpu_custom_call.1} parent=5 // pred_check_branch
        %539 = sbr.rel (%p537) target = $region52
      $region51: #{tpu_custom_call.1} parent=5 // pred_region
        %s540 = ssub.s32 %s19, 2
        // Predicated region
        $region53: #{tpu_custom_call.1} parent=51 // pred_check
          %p541 = pneg %p160
        $region54: #{tpu_custom_call.1} parent=51 // pred_check_branch
          %543 = sbr.rel (%p541) target = $region56
        $region55: #{tpu_custom_call.1} parent=51 // pred_region
          %s544 = sand.u32 %s145, 1
          %s545 = scalar_lea.sflag [#allocation4], %s544
          %s546 = sand.u32 %s145, 1
          %s547 = smul.addr %s546, 8
          %s548 = scalar_lea.vmem [#allocation7], %s547
          %550 = dma.done %s545, 128
        $region56: #{tpu_custom_call.1} parent=51 // pred_fallthru
          _
      $region52: #{tpu_custom_call.1} parent=5 // pred_fallthru
        _
    $region6: #{tpu_custom_call.1} parent=1 // loop_footer
      %s23 = sadd.s32 1, %s19
    $region7: #{tpu_custom_call.1} parent=1 // loop_footer_branch
      %18 = sbr.rel target = $region3
    $region8: #{tpu_custom_call.1} parent=1 // loop_exit
      _
    %551 = vsyncpa [#allocation3], 1
    %s552 = scalar_lea.sflag [#allocation3], 1
    %553 = vsyncpa %s552, 1
    %554 = vsyncpa [#allocation6], 1
    %s555 = scalar_lea.sflag [#allocation6], 1
    %556 = vsyncpa %s555, 1
    %557 = vsyncpa [#allocation4], 1
    %s558 = scalar_lea.sflag [#allocation4], 1
    %559 = vsyncpa %s558, 1

</llo_original>
